<compile_context>
chip_gen: v6e
topology: v6e:2x2x1
jax: 0.10.0
libtpu: 0.0.40
codegen_flags: <defaults>
</compile_context>

<pallas_src>
import jax
import jax.numpy as jnp
from jax.experimental import pallas as pl
from jax.experimental.pallas import tpu as pltpu


# ---------------------------------------------------------------------------
# Kernel A (one-time "fold"): small_table = emb_table @ W^T
# Gridded over vocab-row tiles, MXU matmul, weight resident & single-buffered.
# ---------------------------------------------------------------------------
def _fold_table_kernel(tab_ref, w_ref, out_ref):
    out_ref[...] = jnp.dot(
        tab_ref[...], w_ref[...], preferred_element_type=jnp.float32
    ).astype(out_ref.dtype)


def fold_table(emb_table, linear_weight_t, *, tv=512):
    """emb_table: (V, D_in) f32; linear_weight_t: (D_in, D_out) f32 (torch W transposed).

    Returns the folded table padded to a multiple of `tv` rows: (V_pad, D_out) f32.
    """
    v, d_in = emb_table.shape
    d_out = linear_weight_t.shape[1]
    v_pad = pl.cdiv(v, tv) * tv
    if v_pad != v:
        emb_table = jnp.pad(emb_table, ((0, v_pad - v), (0, 0)))

    itemsize = 4
    vmem_budget = (
        2 * tv * d_in * itemsize       # double-buffered LHS row tiles
        + d_in * d_out * itemsize      # resident weight (single-buffered)
        + 2 * tv * d_out * itemsize    # double-buffered output tiles
        + (4 << 20)                    # slack for compiler-internal scratch
    )

    return pl.pallas_call(
        _fold_table_kernel,
        out_shape=jax.ShapeDtypeStruct((v_pad, d_out), jnp.float32),
        grid=(v_pad // tv,),
        in_specs=[
            pl.BlockSpec((tv, d_in), lambda i: (i, 0)),
            # Constant-index weight block: single buffer (no point double-buffering it).
            pl.BlockSpec((d_in, d_out), lambda i: (0, 0),
                         pipeline_mode=pl.Buffered(1)),
        ],
        out_specs=pl.BlockSpec((tv, d_out), lambda i: (i, 0)),
        compiler_params=pltpu.CompilerParams(
            dimension_semantics=("parallel",),
            vmem_limit_bytes=max(vmem_budget, 16 << 20),
        ),
    )(emb_table, linear_weight_t)


# ---------------------------------------------------------------------------
# Kernel B (per-call "gather"): out[i, :] = small_table[ids[i], :]
# ids per tile in VMEM, folded table VMEM-resident (single-buffered),
# vectorized jnp.take -> lane-dense (tm, D_out) stores, grid over token tiles.
# ---------------------------------------------------------------------------
def _gather_kernel(ids_ref, tab_ref, out_ref):
    # ids_ref: (tm,) i32; tab_ref: (V_pad, D_out) resident; out_ref: (tm, D_out).
    out_ref[...] = jnp.take(tab_ref[...], ids_ref[...], axis=0)


def gather_rows(ids, small_table, *, tm=512):
    """ids: (N,) int32 (already clamped in-bounds). Returns (N_pad, D_out) f32."""
    n = ids.shape[0]
    v_pad, d_out = small_table.shape
    n_pad = pl.cdiv(n, tm) * tm
    if n_pad != n:
        ids = jnp.pad(ids, (0, n_pad - n))

    itemsize = 4
    vmem_budget = (
        v_pad * d_out * itemsize       # resident folded table (single-buffered)
        + 2 * tm * d_out * itemsize    # double-buffered output tiles
        + 2 * tm * 4                   # double-buffered id tiles
        + (4 << 20)
    )
    # TODO(synk): when v_pad * d_out * 4 exceeds ~40 MiB (v7x has 64 MiB VMEM/TC), switch
    # the table spec to memory_space=pl.ANY and DMA-gather rows from HBM with
    # pltpu.make_async_copy double-buffering instead of keeping it VMEM-resident.

    return pl.pallas_call(
        _gather_kernel,
        out_shape=jax.ShapeDtypeStruct((n_pad, d_out), jnp.float32),
        grid=(n_pad // tm,),
        in_specs=[
            pl.BlockSpec((tm,), lambda i: (i,)),                   # per-tile ids (VMEM)
            pl.BlockSpec((v_pad, d_out), lambda i: (0, 0),         # resident table
                         pipeline_mode=pl.Buffered(1)),
        ],
        out_specs=pl.BlockSpec((tm, d_out), lambda i: (i, 0)),
        compiler_params=pltpu.CompilerParams(
            dimension_semantics=("parallel",),
            vmem_limit_bytes=max(vmem_budget, 16 << 20),
        ),
    )(ids, small_table)


# ---------------------------------------------------------------------------
# Direct path (no folded table): gather raw embedding rows + per-tile MXU matmul.
# Use this when emb_table / weight are NOT static across calls (fold can't amortize).
# ---------------------------------------------------------------------------
def _gather_project_kernel(ids_ref, tab_ref, w_ref, out_ref):
    rows = jnp.take(tab_ref[...], ids_ref[...], axis=0)            # (tm, D_in)
    out_ref[...] = jnp.dot(
        rows, w_ref[...], preferred_element_type=jnp.float32
    ).astype(out_ref.dtype)


def to_small_emb_direct(x_ids, emb_table, linear_weight, *, tm=512):
    """x_ids: (B, S) int; emb_table: (V, D_in) f32; linear_weight: (D_out, D_in) f32."""
    b, s = x_ids.shape
    v, d_in = emb_table.shape
    d_out = linear_weight.shape[0]
    w_t = jnp.transpose(linear_weight)                             # (D_in, D_out)

    n = b * s
    n_pad = pl.cdiv(n, tm) * tm
    ids = jnp.clip(x_ids.reshape(n).astype(jnp.int32), 0, v - 1)
    if n_pad != n:
        ids = jnp.pad(ids, (0, n_pad - n))

    itemsize = 4
    vmem_budget = (
        v * d_in * itemsize
        + d_in * d_out * itemsize
        + 2 * tm * d_out * itemsize
        + 2 * tm * 4
        + (4 << 20)
    )

    out_flat = pl.pallas_call(
        _gather_project_kernel,
        out_shape=jax.ShapeDtypeStruct((n_pad, d_out), jnp.float32),
        grid=(n_pad // tm,),
        in_specs=[
            pl.BlockSpec((tm,), lambda i: (i,)),
            pl.BlockSpec((v, d_in), lambda i: (0, 0),
                         pipeline_mode=pl.Buffered(1)),
            pl.BlockSpec((d_in, d_out), lambda i: (0, 0),
                         pipeline_mode=pl.Buffered(1)),
        ],
        out_specs=pl.BlockSpec((tm, d_out), lambda i: (i, 0)),
        compiler_params=pltpu.CompilerParams(
            dimension_semantics=("parallel",),
            vmem_limit_bytes=max(vmem_budget, 16 << 20),
        ),
    )(ids, emb_table, w_t)
    return out_flat[:n].reshape(b, s, d_out)


# ---------------------------------------------------------------------------
# Module wrapper: fold once at construction (== nn.Module.__init__), gather per call.
# ---------------------------------------------------------------------------
class ToSmallEmb:
    def __init__(self, emb_table, linear_weight, *, tv=512, tm=512):
        # emb_table: (V, D_in) f32; linear_weight: (D_out, D_in) f32 (torch nn.Linear layout).
        self.vocab = emb_table.shape[0]
        self.d_out = linear_weight.shape[0]
        self.tm = tm
        # One-time fold, hoisted out of the per-call path (perf review item).
        self.small_table = jax.block_until_ready(
            fold_table(emb_table, jnp.transpose(linear_weight), tv=tv)
        )

    def __call__(self, x_ids):
        b, s = x_ids.shape
        n = b * s
        # Clamp untrusted ids (torch nn.Embedding would raise on OOB; clamping avoids
        # reading arbitrary rows). Valid ids are unaffected.
        ids = jnp.clip(x_ids.reshape(n).astype(jnp.int32), 0, self.vocab - 1)
        out_flat = gather_rows(ids, self.small_table, tm=self.tm)
        return out_flat[:n].reshape(b, s, self.d_out)


if __name__ == "__main__":
    # Small, TPU-friendly shapes: D_in/D_out lane-aligned, seq chosen so the token
    # padding path (120 -> 512 tokens) is exercised.
    batch, seq = 2, 60
    vocab, input_dim, output_dim = 512, 256, 128

    key = jax.random.PRNGKey(0)
    k_ids, k_tab, k_w = jax.random.split(key, 3)

    x = jax.random.randint(k_ids, (batch, seq), 0, vocab, dtype=jnp.int32)
    emb_table = jax.random.normal(k_tab, (vocab, input_dim), dtype=jnp.float32)
    # torch nn.Linear weight layout: (output_dim, input_dim).
    w = jax.random.normal(k_w, (output_dim, input_dim), dtype=jnp.float32) * 0.05

    # Folded path (static weights): fold runs once at construction, gather per call.
    module = ToSmallEmb(emb_table, w)
    out = jax.block_until_ready(module(x))

    # Pure-JAX reference (same forward math as the PyTorch module).
    ref = jnp.take(emb_table, x, axis=0) @ w.T
    assert out.shape == (batch, seq, output_dim)
    assert bool(jnp.allclose(out, ref, atol=1e-4, rtol=1e-4)), float(
        jnp.max(jnp.abs(out - ref))
    )

    # Direct path (non-static weights): gather raw rows + in-kernel matmul.
    out2 = jax.block_until_ready(to_small_emb_direct(x, emb_table, w))
    assert bool(jnp.allclose(out2, ref, atol=1e-4, rtol=1e-4)), float(
        jnp.max(jnp.abs(out2 - ref))
    )

    print("KERNEL_OK")
</pallas_src>

<mosaic_0001>
module attributes {stable_mosaic.version = 11 : i64} {
  func.func @_fold_table_kernel(%arg0: i32, %arg1: memref<512x256xf32, #tpu.memory_space<vmem>>, %arg2: memref<256x128xf32, #tpu.memory_space<vmem>>, %arg3: memref<512x128xf32, #tpu.memory_space<vmem>>) attributes {dimension_semantics = [#tpu.dimension_semantics<parallel>], iteration_bounds = array<i64: 1>, scalar_prefetch = 0 : i64, scratch_operands = 0 : i64, tpu.core_type = #tpu.core_type<tc>, window_params = [{transform_indices = @transform_0, window_bounds = array<i64: 512, 256>}, {pipeline_mode = #tpu.pipeline_mode<synchronous>, transform_indices = @transform_1, window_bounds = array<i64: 256, 128>}, {transform_indices = @transform_2, window_bounds = array<i64: 512, 128>}]} {
    %c0 = arith.constant 0 : index
    %c0_0 = arith.constant 0 : index
    %0 = vector.load %arg1[%c0, %c0_0] : memref<512x256xf32, #tpu.memory_space<vmem>>, vector<512x256xf32>
    %c0_1 = arith.constant 0 : index
    %c0_2 = arith.constant 0 : index
    %1 = vector.load %arg2[%c0_1, %c0_2] : memref<256x128xf32, #tpu.memory_space<vmem>>, vector<256x128xf32>
    %cst = arith.constant dense<0.000000e+00> : vector<512x128xf32>
    %2 = tpu.matmul %0, %1, %cst {dimension_numbers = #tpu.dot_dimension_numbers<[1], [0], [0], [1], [0, 0, 1, 1], [], []>} : vector<512x256xf32>, vector<256x128xf32>, vector<512x128xf32> -> vector<512x128xf32>
    %c0_3 = arith.constant 0 : index
    %c0_4 = arith.constant 0 : index
    %3 = vector.load %arg3[%c0_3, %c0_4] : memref<512x128xf32, #tpu.memory_space<vmem>>, vector<512x128xf32>
    tpu.vector_store %arg3[%c0_3, %c0_4], %2 {strides = array<i32>} : memref<512x128xf32, #tpu.memory_space<vmem>>, vector<512x128xf32>,
    return
  }
  func.func @transform_0(%arg0: i32) -> (i32, i32) {
    %c0_i32 = arith.constant 0 : i32
    %c0_i32_0 = arith.constant 0 : i32
    return %arg0, %c0_i32 : i32, i32
  }
  func.func @transform_1(%arg0: i32) -> (i32, i32) {
    %c0_i32 = arith.constant 0 : i32
    %c0_i32_0 = arith.constant 0 : i32
    %c0_i32_1 = arith.constant 0 : i32
    return %c0_i32, %c0_i32_0 : i32, i32
  }
  func.func @transform_2(%arg0: i32) -> (i32, i32) {
    %c0_i32 = arith.constant 0 : i32
    %c0_i32_0 = arith.constant 0 : i32
    return %arg0, %c0_i32 : i32, i32
  }
}

</mosaic_0001>

<llo_original>
// kernel: tpu_custom_call.1
$region0: #{tpu_custom_call.1}
  #allocation0 [shape = 'u32[]', space=smem, size = 0x4, offset = 0x4, fixed_abs, tag = 'smem constant byte address 0x4 - core index']
  #allocation1 [shape = 'u32[144,128]{1,0:T(1,128)}', space=vmem, size = 0x12000, scoped, tag = 'internal scratch']
  %s0 = inlined_call_operand.hbm [shape: f32[512,256], index: 0, kind: input, shape index: {}]
  %s1 = inlined_call_operand.hbm [shape: f32[256,128], index: 1, kind: input, shape index: {}]
  %s2 = inlined_call_operand.hbm [shape: f32[512,128], index: 2, kind: output, shape index: {}]
  %s3 = sld [smem:[#allocation0]]
  $region26: #{tpu_custom_call.1} parent=0
    _
  %s5 = ssub.s32 1, %s3
  %s6 = scalar_select 0, %s5, %s3
  $region1: #{tpu_custom_call.1} parent=0
    #allocation2 [shape = 'u8[524288]{0}', space=vmem, size = 0x80000, scoped, tag = 'input window, operand 0, single buffered']
    #allocation3 [shape = 's32[1]{0}', space=sflag, size = 0x4, scoped, tag = 'scoped memory for tpu_custom_call.1']
    #allocation4 [shape = 's32[1]{0}', space=sflag, size = 0x4, scoped, tag = 'scoped memory for tpu_custom_call.1']
    #allocation5 [shape = 'u8[131072]{0}', space=vmem, size = 0x20000, scoped, tag = 'input window, operand 1, single buffered']
    #allocation6 [shape = 's32[1]{0}', space=sflag, size = 0x4, scoped, tag = 'scoped memory for tpu_custom_call.1']
    #allocation7 [shape = 'u8[262144]{0}', space=vmem, size = 0x40000, scoped, tag = 'output window, operand 0, single buffered']
    %7 = vsyncpa [#allocation3], 0
    %8 = vsyncpa [#allocation6], 0
    %9 = vsyncpa [#allocation4], 0
    // Predicated region
    $region2: #{tpu_custom_call.1} parent=1 // pred_check
      _
    $region3: #{tpu_custom_call.1} parent=1 // pred_check_branch
      %11 = sbr.rel (0) target = $region5
    $region4: #{tpu_custom_call.1} parent=1 // pred_region
      %s13 = ssub.s32 16384, 16384
      %14 = vsyncadd [#allocation3], %s13
      %s15 = sshll.u32 [#allocation2], 4
      %s16 = int_to_ptr.vmem [resolvable:$true] %s15
      %21 = dma.hbm_to_vmem [thread:$0]  %s0, 16384, %s16, [#allocation3], 256, 256, 16
    $region5: #{tpu_custom_call.1} parent=1 // pred_fallthru
      _
    // Predicated region
    $region6: #{tpu_custom_call.1} parent=1 // pred_check
      _
    $region7: #{tpu_custom_call.1} parent=1 // pred_check_branch
      %23 = sbr.rel (0) target = $region9
    $region8: #{tpu_custom_call.1} parent=1 // pred_region
      %s25 = ssub.s32 4096, 4096
      %26 = vsyncadd [#allocation6], %s25
      %s27 = sshll.u32 [#allocation5], 4
      %s28 = int_to_ptr.vmem [resolvable:$true] %s27
      %33 = dma.hbm_to_vmem [thread:$0]  %s1, 4096, %s28, [#allocation6], 128, 128, 8
    $region9: #{tpu_custom_call.1} parent=1 // pred_fallthru
      _
    // Predicated region
    $region10: #{tpu_custom_call.1} parent=1 // pred_check
      _
    $region11: #{tpu_custom_call.1} parent=1 // pred_check_branch
      %35 = sbr.rel (0) target = $region13
    $region12: #{tpu_custom_call.1} parent=1 // pred_region
      %36 = dma.done [#allocation3], 16384
    $region13: #{tpu_custom_call.1} parent=1 // pred_fallthru
      _
    // Predicated region
    $region14: #{tpu_custom_call.1} parent=1 // pred_check
      _
    $region15: #{tpu_custom_call.1} parent=1 // pred_check_branch
      %38 = sbr.rel (0) target = $region17
    $region16: #{tpu_custom_call.1} parent=1 // pred_region
      %39 = dma.done [#allocation6], 4096
    $region17: #{tpu_custom_call.1} parent=1 // pred_fallthru
      _
    %v40 = vld [vmem:[#allocation2] sm:$0xff]
    %v41 = vld [vmem:[#allocation2 + $0x8] sm:$0xff]
    %v42 = vld [vmem:[#allocation2 + $0x10] sm:$0xff]
    %v43 = vld [vmem:[#allocation2 + $0x18] sm:$0xff]
    %v44 = vld [vmem:[#allocation2 + $0x20] sm:$0xff]
    %v45 = vld [vmem:[#allocation2 + $0x28] sm:$0xff]
    %v46 = vld [vmem:[#allocation2 + $0x30] sm:$0xff]
    %v47 = vld [vmem:[#allocation2 + $0x38] sm:$0xff]
    %v48 = vld [vmem:[#allocation2 + $0x40] sm:$0xff]
    %v49 = vld [vmem:[#allocation2 + $0x48] sm:$0xff]
    %v50 = vld [vmem:[#allocation2 + $0x50] sm:$0xff]
    %v51 = vld [vmem:[#allocation2 + $0x58] sm:$0xff]
    %v52 = vld [vmem:[#allocation2 + $0x60] sm:$0xff]
    %v53 = vld [vmem:[#allocation2 + $0x68] sm:$0xff]
    %v54 = vld [vmem:[#allocation2 + $0x70] sm:$0xff]
    %v55 = vld [vmem:[#allocation2 + $0x78] sm:$0xff]
    %v56 = vld [vmem:[#allocation2 + $0x80] sm:$0xff]
    %v57 = vld [vmem:[#allocation2 + $0x88] sm:$0xff]
    %v58 = vld [vmem:[#allocation2 + $0x90] sm:$0xff]
    %v59 = vld [vmem:[#allocation2 + $0x98] sm:$0xff]
    %v60 = vld [vmem:[#allocation2 + $0xa0] sm:$0xff]
    %v61 = vld [vmem:[#allocation2 + $0xa8] sm:$0xff]
    %v62 = vld [vmem:[#allocation2 + $0xb0] sm:$0xff]
    %v63 = vld [vmem:[#allocation2 + $0xb8] sm:$0xff]
    %v64 = vld [vmem:[#allocation2 + $0xc0] sm:$0xff]
    %v65 = vld [vmem:[#allocation2 + $0xc8] sm:$0xff]
    %v66 = vld [vmem:[#allocation2 + $0xd0] sm:$0xff]
    %v67 = vld [vmem:[#allocation2 + $0xd8] sm:$0xff]
    %v68 = vld [vmem:[#allocation2 + $0xe0] sm:$0xff]
    %v69 = vld [vmem:[#allocation2 + $0xe8] sm:$0xff]
    %v70 = vld [vmem:[#allocation2 + $0xf0] sm:$0xff]
    %v71 = vld [vmem:[#allocation2 + $0xf8] sm:$0xff]
    %v72 = vld [vmem:[#allocation2 + $0x100] sm:$0xff]
    %v73 = vld [vmem:[#allocation2 + $0x108] sm:$0xff]
    %v74 = vld [vmem:[#allocation2 + $0x110] sm:$0xff]
    %v75 = vld [vmem:[#allocation2 + $0x118] sm:$0xff]
    %v76 = vld [vmem:[#allocation2 + $0x120] sm:$0xff]
    %v77 = vld [vmem:[#allocation2 + $0x128] sm:$0xff]
    %v78 = vld [vmem:[#allocation2 + $0x130] sm:$0xff]
    %v79 = vld [vmem:[#allocation2 + $0x138] sm:$0xff]
    %v80 = vld [vmem:[#allocation2 + $0x140] sm:$0xff]
    %v81 = vld [vmem:[#allocation2 + $0x148] sm:$0xff]
    %v82 = vld [vmem:[#allocation2 + $0x150] sm:$0xff]
    %v83 = vld [vmem:[#allocation2 + $0x158] sm:$0xff]
    %v84 = vld [vmem:[#allocation2 + $0x160] sm:$0xff]
    %v85 = vld [vmem:[#allocation2 + $0x168] sm:$0xff]
    %v86 = vld [vmem:[#allocation2 + $0x170] sm:$0xff]
    %v87 = vld [vmem:[#allocation2 + $0x178] sm:$0xff]
    %v88 = vld [vmem:[#allocation2 + $0x180] sm:$0xff]
    %v89 = vld [vmem:[#allocation2 + $0x188] sm:$0xff]
    %v90 = vld [vmem:[#allocation2 + $0x190] sm:$0xff]
    %v91 = vld [vmem:[#allocation2 + $0x198] sm:$0xff]
    %v92 = vld [vmem:[#allocation2 + $0x1a0] sm:$0xff]
    %v93 = vld [vmem:[#allocation2 + $0x1a8] sm:$0xff]
    %v94 = vld [vmem:[#allocation2 + $0x1b0] sm:$0xff]
    %v95 = vld [vmem:[#allocation2 + $0x1b8] sm:$0xff]
    %v96 = vld [vmem:[#allocation2 + $0x1c0] sm:$0xff]
    %v97 = vld [vmem:[#allocation2 + $0x1c8] sm:$0xff]
    %v98 = vld [vmem:[#allocation2 + $0x1d0] sm:$0xff]
    %v99 = vld [vmem:[#allocation2 + $0x1d8] sm:$0xff]
    %v100 = vld [vmem:[#allocation2 + $0x1e0] sm:$0xff]
    %v101 = vld [vmem:[#allocation2 + $0x1e8] sm:$0xff]
    %v102 = vld [vmem:[#allocation2 + $0x1f0] sm:$0xff]
    %v103 = vld [vmem:[#allocation2 + $0x1f8] sm:$0xff]
    %v104 = vld [vmem:[#allocation2 + $0x200] sm:$0xff]
    %v105 = vld [vmem:[#allocation2 + $0x208] sm:$0xff]
    %v106 = vld [vmem:[#allocation2 + $0x210] sm:$0xff]
    %v107 = vld [vmem:[#allocation2 + $0x218] sm:$0xff]
    %v108 = vld [vmem:[#allocation2 + $0x220] sm:$0xff]
    %v109 = vld [vmem:[#allocation2 + $0x228] sm:$0xff]
    %v110 = vld [vmem:[#allocation2 + $0x230] sm:$0xff]
    %v111 = vld [vmem:[#allocation2 + $0x238] sm:$0xff]
    %v112 = vld [vmem:[#allocation2 + $0x240] sm:$0xff]
    %v113 = vld [vmem:[#allocation2 + $0x248] sm:$0xff]
    %v114 = vld [vmem:[#allocation2 + $0x250] sm:$0xff]
    %v115 = vld [vmem:[#allocation2 + $0x258] sm:$0xff]
    %v116 = vld [vmem:[#allocation2 + $0x260] sm:$0xff]
    %v117 = vld [vmem:[#allocation2 + $0x268] sm:$0xff]
    %v118 = vld [vmem:[#allocation2 + $0x270] sm:$0xff]
    %v119 = vld [vmem:[#allocation2 + $0x278] sm:$0xff]
    %v120 = vld [vmem:[#allocation2 + $0x280] sm:$0xff]
    %v121 = vld [vmem:[#allocation2 + $0x288] sm:$0xff]
    %v122 = vld [vmem:[#allocation2 + $0x290] sm:$0xff]
    %v123 = vld [vmem:[#allocation2 + $0x298] sm:$0xff]
    %v124 = vld [vmem:[#allocation2 + $0x2a0] sm:$0xff]
    %v125 = vld [vmem:[#allocation2 + $0x2a8] sm:$0xff]
    %v126 = vld [vmem:[#allocation2 + $0x2b0] sm:$0xff]
    %v127 = vld [vmem:[#allocation2 + $0x2b8] sm:$0xff]
    %v128 = vld [vmem:[#allocation2 + $0x2c0] sm:$0xff]
    %v129 = vld [vmem:[#allocation2 + $0x2c8] sm:$0xff]
    %v130 = vld [vmem:[#allocation2 + $0x2d0] sm:$0xff]
    %v131 = vld [vmem:[#allocation2 + $0x2d8] sm:$0xff]
    %v132 = vld [vmem:[#allocation2 + $0x2e0] sm:$0xff]
    %v133 = vld [vmem:[#allocation2 + $0x2e8] sm:$0xff]
    %v134 = vld [vmem:[#allocation2 + $0x2f0] sm:$0xff]
    %v135 = vld [vmem:[#allocation2 + $0x2f8] sm:$0xff]
    %v136 = vld [vmem:[#allocation2 + $0x300] sm:$0xff]
    %v137 = vld [vmem:[#allocation2 + $0x308] sm:$0xff]
    %v138 = vld [vmem:[#allocation2 + $0x310] sm:$0xff]
    %v139 = vld [vmem:[#allocation2 + $0x318] sm:$0xff]
    %v140 = vld [vmem:[#allocation2 + $0x320] sm:$0xff]
    %v141 = vld [vmem:[#allocation2 + $0x328] sm:$0xff]
    %v142 = vld [vmem:[#allocation2 + $0x330] sm:$0xff]
    %v143 = vld [vmem:[#allocation2 + $0x338] sm:$0xff]
    %v144 = vld [vmem:[#allocation2 + $0x340] sm:$0xff]
    %v145 = vld [vmem:[#allocation2 + $0x348] sm:$0xff]
    %v146 = vld [vmem:[#allocation2 + $0x350] sm:$0xff]
    %v147 = vld [vmem:[#allocation2 + $0x358] sm:$0xff]
    %v148 = vld [vmem:[#allocation2 + $0x360] sm:$0xff]
    %v149 = vld [vmem:[#allocation2 + $0x368] sm:$0xff]
    %v150 = vld [vmem:[#allocation2 + $0x370] sm:$0xff]
    %v151 = vld [vmem:[#allocation2 + $0x378] sm:$0xff]
    %v152 = vld [vmem:[#allocation2 + $0x380] sm:$0xff]
    %v153 = vld [vmem:[#allocation2 + $0x388] sm:$0xff]
    %v154 = vld [vmem:[#allocation2 + $0x390] sm:$0xff]
    %v155 = vld [vmem:[#allocation2 + $0x398] sm:$0xff]
    %v156 = vld [vmem:[#allocation2 + $0x3a0] sm:$0xff]
    %v157 = vld [vmem:[#allocation2 + $0x3a8] sm:$0xff]
    %v158 = vld [vmem:[#allocation2 + $0x3b0] sm:$0xff]
    %v159 = vld [vmem:[#allocation2 + $0x3b8] sm:$0xff]
    %v160 = vld [vmem:[#allocation2 + $0x3c0] sm:$0xff]
    %v161 = vld [vmem:[#allocation2 + $0x3c8] sm:$0xff]
    %v162 = vld [vmem:[#allocation2 + $0x3d0] sm:$0xff]
    %v163 = vld [vmem:[#allocation2 + $0x3d8] sm:$0xff]
    %v164 = vld [vmem:[#allocation2 + $0x3e0] sm:$0xff]
    %v165 = vld [vmem:[#allocation2 + $0x3e8] sm:$0xff]
    %v166 = vld [vmem:[#allocation2 + $0x3f0] sm:$0xff]
    %v167 = vld [vmem:[#allocation2 + $0x3f8] sm:$0xff]
    %v168 = vld [vmem:[#allocation5] sm:$0xff]
    %v169 = vld [vmem:[#allocation5 + $0x8] sm:$0xff]
    %v170 = vld [vmem:[#allocation5 + $0x10] sm:$0xff]
    %v171 = vld [vmem:[#allocation5 + $0x18] sm:$0xff]
    %v172 = vld [vmem:[#allocation5 + $0x20] sm:$0xff]
    %v173 = vld [vmem:[#allocation5 + $0x28] sm:$0xff]
    %v174 = vld [vmem:[#allocation5 + $0x30] sm:$0xff]
    %v175 = vld [vmem:[#allocation5 + $0x38] sm:$0xff]
    %v176 = vld [vmem:[#allocation5 + $0x40] sm:$0xff]
    %v177 = vld [vmem:[#allocation5 + $0x48] sm:$0xff]
    %v178 = vld [vmem:[#allocation5 + $0x50] sm:$0xff]
    %v179 = vld [vmem:[#allocation5 + $0x58] sm:$0xff]
    %v180 = vld [vmem:[#allocation5 + $0x60] sm:$0xff]
    %v181 = vld [vmem:[#allocation5 + $0x68] sm:$0xff]
    %v182 = vld [vmem:[#allocation5 + $0x70] sm:$0xff]
    %v183 = vld [vmem:[#allocation5 + $0x78] sm:$0xff]
    %v184 = vld [vmem:[#allocation5 + $0x80] sm:$0xff]
    %v185 = vld [vmem:[#allocation5 + $0x88] sm:$0xff]
    %v186 = vld [vmem:[#allocation5 + $0x90] sm:$0xff]
    %v187 = vld [vmem:[#allocation5 + $0x98] sm:$0xff]
    %v188 = vld [vmem:[#allocation5 + $0xa0] sm:$0xff]
    %v189 = vld [vmem:[#allocation5 + $0xa8] sm:$0xff]
    %v190 = vld [vmem:[#allocation5 + $0xb0] sm:$0xff]
    %v191 = vld [vmem:[#allocation5 + $0xb8] sm:$0xff]
    %v192 = vld [vmem:[#allocation5 + $0xc0] sm:$0xff]
    %v193 = vld [vmem:[#allocation5 + $0xc8] sm:$0xff]
    %v194 = vld [vmem:[#allocation5 + $0xd0] sm:$0xff]
    %v195 = vld [vmem:[#allocation5 + $0xd8] sm:$0xff]
    %v196 = vld [vmem:[#allocation5 + $0xe0] sm:$0xff]
    %v197 = vld [vmem:[#allocation5 + $0xe8] sm:$0xff]
    %v198 = vld [vmem:[#allocation5 + $0xf0] sm:$0xff]
    %v199 = vld [vmem:[#allocation5 + $0xf8] sm:$0xff]
    %200 = vmatprep.subr.mxu0 0.0
    %201 = vmatpush1.msra.mxu0 %v183
    %202 = vmatprep.subr.mxu0 0.0
    %203 = vmatpush1.msra.mxu0 %v182
    %204 = vmatprep.subr.mxu0 0.0
    %205 = vmatpush1.msra.mxu0 %v181
    %206 = vmatprep.subr.mxu0 0.0
    %207 = vmatpush1.msra.mxu0 %v180
    %208 = vmatprep.subr.mxu0 0.0
    %209 = vmatpush1.msra.mxu0 %v179
    %210 = vmatprep.subr.mxu0 0.0
    %211 = vmatpush1.msra.mxu0 %v178
    %212 = vmatprep.subr.mxu0 0.0
    %213 = vmatpush1.msra.mxu0 %v177
    %214 = vmatprep.subr.mxu0 0.0
    %215 = vmatpush1.msra.mxu0 %v176
    %216 = vmatprep.subr.mxu0 0.0
    %217 = vmatpush1.msra.mxu0 %v175
    %218 = vmatprep.subr.mxu0 0.0
    %219 = vmatpush1.msra.mxu0 %v174
    %220 = vmatprep.subr.mxu0 0.0
    %221 = vmatpush1.msra.mxu0 %v173
    %222 = vmatprep.subr.mxu0 0.0
    %223 = vmatpush1.msra.mxu0 %v172
    %224 = vmatprep.subr.mxu0 0.0
    %225 = vmatpush1.msra.mxu0 %v171
    %226 = vmatprep.subr.mxu0 0.0
    %227 = vmatpush1.msra.mxu0 %v170
    %228 = vmatprep.subr.mxu0 0.0
    %229 = vmatpush1.msra.mxu0 %v169
    %230 = vmatprep.subr.mxu0 0.0
    %231 = vmatpush1.msra.mxu0 %v168
    %232 = vmatprep.subr.mxu0 0.0
    %233 = vmatpush2.msra.mxu0 %v199
    %234 = vmatprep.subr.mxu0 0.0
    %235 = vmatpush2.msra.mxu0 %v198
    %236 = vmatprep.subr.mxu0 0.0
    %237 = vmatpush2.msra.mxu0 %v197
    %238 = vmatprep.subr.mxu0 0.0
    %239 = vmatpush2.msra.mxu0 %v196
    %240 = vmatprep.subr.mxu0 0.0
    %241 = vmatpush2.msra.mxu0 %v195
    %242 = vmatprep.subr.mxu0 0.0
    %243 = vmatpush2.msra.mxu0 %v194
    %244 = vmatprep.subr.mxu0 0.0
    %245 = vmatpush2.msra.mxu0 %v193
    %246 = vmatprep.subr.mxu0 0.0
    %247 = vmatpush2.msra.mxu0 %v192
    %248 = vmatprep.subr.mxu0 0.0
    %249 = vmatpush2.msra.mxu0 %v191
    %250 = vmatprep.subr.mxu0 0.0
    %251 = vmatpush2.msra.mxu0 %v190
    %252 = vmatprep.subr.mxu0 0.0
    %253 = vmatpush2.msra.mxu0 %v189
    %254 = vmatprep.subr.mxu0 0.0
    %255 = vmatpush2.msra.mxu0 %v188
    %256 = vmatprep.subr.mxu0 0.0
    %257 = vmatpush2.msra.mxu0 %v187
    %258 = vmatprep.subr.mxu0 0.0
    %259 = vmatpush2.msra.mxu0 %v186
    %260 = vmatprep.subr.mxu0 0.0
    %261 = vmatpush2.msra.mxu0 %v185
    %262 = vmatprep.subr.mxu0 0.0
    %263 = vmatpush2.msra.mxu0 %v184
    %264 = vmatprep.mubr.f32.mxu0 %v41
    %265 = vmatmul.mubr.f32.gmra.mxu0 %v40
    %v266 = vpop.f32.mrf.mxu0
    %v267 = vadd.f32 0.0, %v266
    %v268 = vpop.f32.mrf.mxu0
    %269 = vmatprep.mubr.f32.mxu0 %v43
    %270 = vmatmul.mubr.f32.gmra.mxu0 %v42
    %v271 = vpop.f32.mrf.mxu0
    %v272 = vadd.f32 0.0, %v271
    %v273 = vpop.f32.mrf.mxu0
    %274 = vmatprep.mubr.f32.mxu0 %v45
    %275 = vmatmul.mubr.f32.gmra.mxu0 %v44
    %v276 = vpop.f32.mrf.mxu0
    %v277 = vadd.f32 0.0, %v276
    %v278 = vpop.f32.mrf.mxu0
    %279 = vmatprep.mubr.f32.mxu0 %v47
    %280 = vmatmul.mubr.f32.gmra.mxu0 %v46
    %v281 = vpop.f32.mrf.mxu0
    %v282 = vadd.f32 0.0, %v281
    %v283 = vpop.f32.mrf.mxu0
    %284 = vmatprep.mubr.f32.mxu0 %v49
    %285 = vmatmul.mubr.f32.gmra.mxu0 %v48
    %v286 = vpop.f32.mrf.mxu0
    %v287 = vadd.f32 0.0, %v286
    %v288 = vpop.f32.mrf.mxu0
    %289 = vmatprep.mubr.f32.mxu0 %v51
    %290 = vmatmul.mubr.f32.gmra.mxu0 %v50
    %v291 = vpop.f32.mrf.mxu0
    %v292 = vadd.f32 0.0, %v291
    %v293 = vpop.f32.mrf.mxu0
    %294 = vmatprep.mubr.f32.mxu0 %v53
    %295 = vmatmul.mubr.f32.gmra.mxu0 %v52
    %v296 = vpop.f32.mrf.mxu0
    %v297 = vadd.f32 0.0, %v296
    %v298 = vpop.f32.mrf.mxu0
    %299 = vmatprep.mubr.f32.mxu0 %v55
    %300 = vmatmul.mubr.f32.gmra.mxu0 %v54
    %v301 = vpop.f32.mrf.mxu0
    %v302 = vadd.f32 0.0, %v301
    %v303 = vpop.f32.mrf.mxu0
    %304 = vmatprep.mubr.f32.mxu0 %v57
    %305 = vmatmul.mubr.f32.gmra.mxu0 %v56
    %v306 = vpop.f32.mrf.mxu0
    %v307 = vadd.f32 0.0, %v306
    %v308 = vpop.f32.mrf.mxu0
    %309 = vmatprep.mubr.f32.mxu0 %v59
    %310 = vmatmul.mubr.f32.gmra.mxu0 %v58
    %v311 = vpop.f32.mrf.mxu0
    %v312 = vadd.f32 0.0, %v311
    %v313 = vpop.f32.mrf.mxu0
    %314 = vmatprep.mubr.f32.mxu0 %v61
    %315 = vmatmul.mubr.f32.gmra.mxu0 %v60
    %v316 = vpop.f32.mrf.mxu0
    %v317 = vadd.f32 0.0, %v316
    %v318 = vpop.f32.mrf.mxu0
    %319 = vmatprep.mubr.f32.mxu0 %v63
    %320 = vmatmul.mubr.f32.gmra.mxu0 %v62
    %v321 = vpop.f32.mrf.mxu0
    %v322 = vadd.f32 0.0, %v321
    %v323 = vpop.f32.mrf.mxu0
    %324 = vmatprep.mubr.f32.mxu0 %v65
    %325 = vmatmul.mubr.f32.gmra.mxu0 %v64
    %v326 = vpop.f32.mrf.mxu0
    %v327 = vadd.f32 0.0, %v326
    %v328 = vpop.f32.mrf.mxu0
    %329 = vmatprep.mubr.f32.mxu0 %v67
    %330 = vmatmul.mubr.f32.gmra.mxu0 %v66
    %v331 = vpop.f32.mrf.mxu0
    %v332 = vadd.f32 0.0, %v331
    %v333 = vpop.f32.mrf.mxu0
    %334 = vmatprep.mubr.f32.mxu0 %v69
    %335 = vmatmul.mubr.f32.gmra.mxu0 %v68
    %v336 = vpop.f32.mrf.mxu0
    %v337 = vadd.f32 0.0, %v336
    %v338 = vpop.f32.mrf.mxu0
    %339 = vmatprep.mubr.f32.mxu0 %v71
    %340 = vmatmul.mubr.f32.gmra.mxu0 %v70
    %v341 = vpop.f32.mrf.mxu0
    %v342 = vadd.f32 0.0, %v341
    %v343 = vpop.f32.mrf.mxu0
    %344 = vmatprep.mubr.f32.mxu0 %v73
    %345 = vmatmul.mubr.f32.gmra.mxu0 %v72
    %v346 = vpop.f32.mrf.mxu0
    %v347 = vadd.f32 0.0, %v346
    %v348 = vpop.f32.mrf.mxu0
    %349 = vmatprep.mubr.f32.mxu0 %v75
    %350 = vmatmul.mubr.f32.gmra.mxu0 %v74
    %v351 = vpop.f32.mrf.mxu0
    %v352 = vadd.f32 0.0, %v351
    %v353 = vpop.f32.mrf.mxu0
    %354 = vmatprep.mubr.f32.mxu0 %v77
    %355 = vmatmul.mubr.f32.gmra.mxu0 %v76
    %v356 = vpop.f32.mrf.mxu0
    %v357 = vadd.f32 0.0, %v356
    %v358 = vpop.f32.mrf.mxu0
    %359 = vmatprep.mubr.f32.mxu0 %v79
    %360 = vmatmul.mubr.f32.gmra.mxu0 %v78
    %v361 = vpop.f32.mrf.mxu0
    %v362 = vadd.f32 0.0, %v361
    %v363 = vpop.f32.mrf.mxu0
    %364 = vmatprep.mubr.f32.mxu0 %v81
    %365 = vmatmul.mubr.f32.gmra.mxu0 %v80
    %v366 = vpop.f32.mrf.mxu0
    %v367 = vadd.f32 0.0, %v366
    %v368 = vpop.f32.mrf.mxu0
    %369 = vmatprep.mubr.f32.mxu0 %v83
    %370 = vmatmul.mubr.f32.gmra.mxu0 %v82
    %v371 = vpop.f32.mrf.mxu0
    %v372 = vadd.f32 0.0, %v371
    %v373 = vpop.f32.mrf.mxu0
    %374 = vmatprep.mubr.f32.mxu0 %v85
    %375 = vmatmul.mubr.f32.gmra.mxu0 %v84
    %v376 = vpop.f32.mrf.mxu0
    %v377 = vadd.f32 0.0, %v376
    %v378 = vpop.f32.mrf.mxu0
    %379 = vmatprep.mubr.f32.mxu0 %v87
    %380 = vmatmul.mubr.f32.gmra.mxu0 %v86
    %v381 = vpop.f32.mrf.mxu0
    %v382 = vadd.f32 0.0, %v381
    %v383 = vpop.f32.mrf.mxu0
    %384 = vmatprep.mubr.f32.mxu0 %v89
    %385 = vmatmul.mubr.f32.gmra.mxu0 %v88
    %v386 = vpop.f32.mrf.mxu0
    %v387 = vadd.f32 0.0, %v386
    %v388 = vpop.f32.mrf.mxu0
    %389 = vmatprep.mubr.f32.mxu0 %v91
    %390 = vmatmul.mubr.f32.gmra.mxu0 %v90
    %v391 = vpop.f32.mrf.mxu0
    %v392 = vadd.f32 0.0, %v391
    %v393 = vpop.f32.mrf.mxu0
    %394 = vmatprep.mubr.f32.mxu0 %v93
    %395 = vmatmul.mubr.f32.gmra.mxu0 %v92
    %v396 = vpop.f32.mrf.mxu0
    %v397 = vadd.f32 0.0, %v396
    %v398 = vpop.f32.mrf.mxu0
    %399 = vmatprep.mubr.f32.mxu0 %v95
    %400 = vmatmul.mubr.f32.gmra.mxu0 %v94
    %v401 = vpop.f32.mrf.mxu0
    %v402 = vadd.f32 0.0, %v401
    %v403 = vpop.f32.mrf.mxu0
    %404 = vmatprep.mubr.f32.mxu0 %v97
    %405 = vmatmul.mubr.f32.gmra.mxu0 %v96
    %v406 = vpop.f32.mrf.mxu0
    %v407 = vadd.f32 0.0, %v406
    %v408 = vpop.f32.mrf.mxu0
    %409 = vmatprep.mubr.f32.mxu0 %v99
    %410 = vmatmul.mubr.f32.gmra.mxu0 %v98
    %v411 = vpop.f32.mrf.mxu0
    %v412 = vadd.f32 0.0, %v411
    %v413 = vpop.f32.mrf.mxu0
    %414 = vmatprep.mubr.f32.mxu0 %v101
    %415 = vmatmul.mubr.f32.gmra.mxu0 %v100
    %v416 = vpop.f32.mrf.mxu0
    %v417 = vadd.f32 0.0, %v416
    %v418 = vpop.f32.mrf.mxu0
    %419 = vmatprep.mubr.f32.mxu0 %v103
    %420 = vmatmul.mubr.f32.gmra.mxu0 %v102
    %v421 = vpop.f32.mrf.mxu0
    %v422 = vadd.f32 0.0, %v421
    %v423 = vpop.f32.mrf.mxu0
    %424 = vmatprep.mubr.f32.mxu0 %v105
    %425 = vmatmul.mubr.f32.gmra.mxu0 %v104
    %v426 = vpop.f32.mrf.mxu0
    %v427 = vadd.f32 0.0, %v426
    %v428 = vpop.f32.mrf.mxu0
    %429 = vmatprep.mubr.f32.mxu0 %v107
    %430 = vmatmul.mubr.f32.gmra.mxu0 %v106
    %v431 = vpop.f32.mrf.mxu0
    %v432 = vadd.f32 0.0, %v431
    %v433 = vpop.f32.mrf.mxu0
    %434 = vmatprep.mubr.f32.mxu0 %v109
    %435 = vmatmul.mubr.f32.gmra.mxu0 %v108
    %v436 = vpop.f32.mrf.mxu0
    %v437 = vadd.f32 0.0, %v436
    %v438 = vpop.f32.mrf.mxu0
    %439 = vmatprep.mubr.f32.mxu0 %v111
    %440 = vmatmul.mubr.f32.gmra.mxu0 %v110
    %v441 = vpop.f32.mrf.mxu0
    %v442 = vadd.f32 0.0, %v441
    %v443 = vpop.f32.mrf.mxu0
    %444 = vmatprep.mubr.f32.mxu0 %v113
    %445 = vmatmul.mubr.f32.gmra.mxu0 %v112
    %v446 = vpop.f32.mrf.mxu0
    %v447 = vadd.f32 0.0, %v446
    %v448 = vpop.f32.mrf.mxu0
    %449 = vmatprep.mubr.f32.mxu0 %v115
    %450 = vmatmul.mubr.f32.gmra.mxu0 %v114
    %v451 = vpop.f32.mrf.mxu0
    %v452 = vadd.f32 0.0, %v451
    %v453 = vpop.f32.mrf.mxu0
    %454 = vmatprep.mubr.f32.mxu0 %v117
    %455 = vmatmul.mubr.f32.gmra.mxu0 %v116
    %v456 = vpop.f32.mrf.mxu0
    %v457 = vadd.f32 0.0, %v456
    %v458 = vpop.f32.mrf.mxu0
    %459 = vmatprep.mubr.f32.mxu0 %v119
    %460 = vmatmul.mubr.f32.gmra.mxu0 %v118
    %v461 = vpop.f32.mrf.mxu0
    %v462 = vadd.f32 0.0, %v461
    %v463 = vpop.f32.mrf.mxu0
    %464 = vmatprep.mubr.f32.mxu0 %v121
    %465 = vmatmul.mubr.f32.gmra.mxu0 %v120
    %v466 = vpop.f32.mrf.mxu0
    %v467 = vadd.f32 0.0, %v466
    %v468 = vpop.f32.mrf.mxu0
    %469 = vmatprep.mubr.f32.mxu0 %v123
    %470 = vmatmul.mubr.f32.gmra.mxu0 %v122
    %v471 = vpop.f32.mrf.mxu0
    %v472 = vadd.f32 0.0, %v471
    %v473 = vpop.f32.mrf.mxu0
    %474 = vmatprep.mubr.f32.mxu0 %v125
    %475 = vmatmul.mubr.f32.gmra.mxu0 %v124
    %v476 = vpop.f32.mrf.mxu0
    %v477 = vadd.f32 0.0, %v476
    %v478 = vpop.f32.mrf.mxu0
    %479 = vmatprep.mubr.f32.mxu0 %v127
    %480 = vmatmul.mubr.f32.gmra.mxu0 %v126
    %v481 = vpop.f32.mrf.mxu0
    %v482 = vadd.f32 0.0, %v481
    %v483 = vpop.f32.mrf.mxu0
    %484 = vmatprep.mubr.f32.mxu0 %v129
    %485 = vmatmul.mubr.f32.gmra.mxu0 %v128
    %v486 = vpop.f32.mrf.mxu0
    %v487 = vadd.f32 0.0, %v486
    %v488 = vpop.f32.mrf.mxu0
    %489 = vmatprep.mubr.f32.mxu0 %v131
    %490 = vmatmul.mubr.f32.gmra.mxu0 %v130
    %v491 = vpop.f32.mrf.mxu0
    %v492 = vadd.f32 0.0, %v491
    %v493 = vpop.f32.mrf.mxu0
    %494 = vmatprep.mubr.f32.mxu0 %v133
    %495 = vmatmul.mubr.f32.gmra.mxu0 %v132
    %v496 = vpop.f32.mrf.mxu0
    %v497 = vadd.f32 0.0, %v496
    %v498 = vpop.f32.mrf.mxu0
    %499 = vmatprep.mubr.f32.mxu0 %v135
    %500 = vmatmul.mubr.f32.gmra.mxu0 %v134
    %v501 = vpop.f32.mrf.mxu0
    %v502 = vadd.f32 0.0, %v501
    %v503 = vpop.f32.mrf.mxu0
    %504 = vmatprep.mubr.f32.mxu0 %v137
    %505 = vmatmul.mubr.f32.gmra.mxu0 %v136
    %v506 = vpop.f32.mrf.mxu0
    %v507 = vadd.f32 0.0, %v506
    %v508 = vpop.f32.mrf.mxu0
    %509 = vmatprep.mubr.f32.mxu0 %v139
    %510 = vmatmul.mubr.f32.gmra.mxu0 %v138
    %v511 = vpop.f32.mrf.mxu0
    %v512 = vadd.f32 0.0, %v511
    %v513 = vpop.f32.mrf.mxu0
    %514 = vmatprep.mubr.f32.mxu0 %v141
    %515 = vmatmul.mubr.f32.gmra.mxu0 %v140
    %v516 = vpop.f32.mrf.mxu0
    %v517 = vadd.f32 0.0, %v516
    %v518 = vpop.f32.mrf.mxu0
    %519 = vmatprep.mubr.f32.mxu0 %v143
    %520 = vmatmul.mubr.f32.gmra.mxu0 %v142
    %v521 = vpop.f32.mrf.mxu0
    %v522 = vadd.f32 0.0, %v521
    %v523 = vpop.f32.mrf.mxu0
    %524 = vmatprep.mubr.f32.mxu0 %v145
    %525 = vmatmul.mubr.f32.gmra.mxu0 %v144
    %v526 = vpop.f32.mrf.mxu0
    %v527 = vadd.f32 0.0, %v526
    %v528 = vpop.f32.mrf.mxu0
    %529 = vmatprep.mubr.f32.mxu0 %v147
    %530 = vmatmul.mubr.f32.gmra.mxu0 %v146
    %v531 = vpop.f32.mrf.mxu0
    %v532 = vadd.f32 0.0, %v531
    %v533 = vpop.f32.mrf.mxu0
    %534 = vmatprep.mubr.f32.mxu0 %v149
    %535 = vmatmul.mubr.f32.gmra.mxu0 %v148
    %v536 = vpop.f32.mrf.mxu0
    %v537 = vadd.f32 0.0, %v536
    %v538 = vpop.f32.mrf.mxu0
    %539 = vmatprep.mubr.f32.mxu0 %v151
    %540 = vmatmul.mubr.f32.gmra.mxu0 %v150
    %v541 = vpop.f32.mrf.mxu0
    %v542 = vadd.f32 0.0, %v541
    %v543 = vpop.f32.mrf.mxu0
    %544 = vmatprep.mubr.f32.mxu0 %v153
    %545 = vmatmul.mubr.f32.gmra.mxu0 %v152
    %v546 = vpop.f32.mrf.mxu0
    %v547 = vadd.f32 0.0, %v546
    %v548 = vpop.f32.mrf.mxu0
    %549 = vmatprep.mubr.f32.mxu0 %v155
    %550 = vmatmul.mubr.f32.gmra.mxu0 %v154
    %v551 = vpop.f32.mrf.mxu0
    %v552 = vadd.f32 0.0, %v551
    %v553 = vpop.f32.mrf.mxu0
    %554 = vmatprep.mubr.f32.mxu0 %v157
    %555 = vmatmul.mubr.f32.gmra.mxu0 %v156
    %v556 = vpop.f32.mrf.mxu0
    %v557 = vadd.f32 0.0, %v556
    %v558 = vpop.f32.mrf.mxu0
    %559 = vmatprep.mubr.f32.mxu0 %v159
    %560 = vmatmul.mubr.f32.gmra.mxu0 %v158
    %v561 = vpop.f32.mrf.mxu0
    %v562 = vadd.f32 0.0, %v561
    %v563 = vpop.f32.mrf.mxu0
    %564 = vmatprep.mubr.f32.mxu0 %v161
    %565 = vmatmul.mubr.f32.gmra.mxu0 %v160
    %v566 = vpop.f32.mrf.mxu0
    %v567 = vadd.f32 0.0, %v566
    %v568 = vpop.f32.mrf.mxu0
    %569 = vmatprep.mubr.f32.mxu0 %v163
    %570 = vmatmul.mubr.f32.gmra.mxu0 %v162
    %v571 = vpop.f32.mrf.mxu0
    %v572 = vadd.f32 0.0, %v571
    %v573 = vpop.f32.mrf.mxu0
    %574 = vmatprep.mubr.f32.mxu0 %v165
    %575 = vmatmul.mubr.f32.gmra.mxu0 %v164
    %v576 = vpop.f32.mrf.mxu0
    %v577 = vadd.f32 0.0, %v576
    %v578 = vpop.f32.mrf.mxu0
    %579 = vmatprep.mubr.f32.mxu0 %v167
    %580 = vmatmul.mubr.f32.gmra.mxu0 %v166
    %v581 = vpop.f32.mrf.mxu0
    %v582 = vadd.f32 0.0, %v581
    %v583 = vpop.f32.mrf.mxu0
    %584 = vdwg.mxu0
    %585 = vst [vmem:[#allocation7] sm:$0xff] %v267
    %586 = vst [vmem:[#allocation7 + $0x8] sm:$0xff] %v272
    %587 = vst [vmem:[#allocation7 + $0x10] sm:$0xff] %v277
    %588 = vst [vmem:[#allocation7 + $0x18] sm:$0xff] %v282
    %589 = vst [vmem:[#allocation7 + $0x20] sm:$0xff] %v287
    %590 = vst [vmem:[#allocation7 + $0x28] sm:$0xff] %v292
    %591 = vst [vmem:[#allocation7 + $0x30] sm:$0xff] %v297
    %592 = vst [vmem:[#allocation7 + $0x38] sm:$0xff] %v302
    %593 = vst [vmem:[#allocation7 + $0x40] sm:$0xff] %v307
    %594 = vst [vmem:[#allocation7 + $0x48] sm:$0xff] %v312
    %595 = vst [vmem:[#allocation7 + $0x50] sm:$0xff] %v317
    %596 = vst [vmem:[#allocation7 + $0x58] sm:$0xff] %v322
    %597 = vst [vmem:[#allocation7 + $0x60] sm:$0xff] %v327
    %598 = vst [vmem:[#allocation7 + $0x68] sm:$0xff] %v332
    %599 = vst [vmem:[#allocation7 + $0x70] sm:$0xff] %v337
    %600 = vst [vmem:[#allocation7 + $0x78] sm:$0xff] %v342
    %601 = vst [vmem:[#allocation7 + $0x80] sm:$0xff] %v347
    %602 = vst [vmem:[#allocation7 + $0x88] sm:$0xff] %v352
    %603 = vst [vmem:[#allocation7 + $0x90] sm:$0xff] %v357
    %604 = vst [vmem:[#allocation7 + $0x98] sm:$0xff] %v362
    %605 = vst [vmem:[#allocation7 + $0xa0] sm:$0xff] %v367
    %606 = vst [vmem:[#allocation7 + $0xa8] sm:$0xff] %v372
    %607 = vst [vmem:[#allocation7 + $0xb0] sm:$0xff] %v377
    %608 = vst [vmem:[#allocation7 + $0xb8] sm:$0xff] %v382
    %609 = vst [vmem:[#allocation7 + $0xc0] sm:$0xff] %v387
    %610 = vst [vmem:[#allocation7 + $0xc8] sm:$0xff] %v392
    %611 = vst [vmem:[#allocation7 + $0xd0] sm:$0xff] %v397
    %612 = vst [vmem:[#allocation7 + $0xd8] sm:$0xff] %v402
    %613 = vst [vmem:[#allocation7 + $0xe0] sm:$0xff] %v407
    %614 = vst [vmem:[#allocation7 + $0xe8] sm:$0xff] %v412
    %615 = vst [vmem:[#allocation7 + $0xf0] sm:$0xff] %v417
    %616 = vst [vmem:[#allocation7 + $0xf8] sm:$0xff] %v422
    %617 = vst [vmem:[#allocation7 + $0x100] sm:$0xff] %v427
    %618 = vst [vmem:[#allocation7 + $0x108] sm:$0xff] %v432
    %619 = vst [vmem:[#allocation7 + $0x110] sm:$0xff] %v437
    %620 = vst [vmem:[#allocation7 + $0x118] sm:$0xff] %v442
    %621 = vst [vmem:[#allocation7 + $0x120] sm:$0xff] %v447
    %622 = vst [vmem:[#allocation7 + $0x128] sm:$0xff] %v452
    %623 = vst [vmem:[#allocation7 + $0x130] sm:$0xff] %v457
    %624 = vst [vmem:[#allocation7 + $0x138] sm:$0xff] %v462
    %625 = vst [vmem:[#allocation7 + $0x140] sm:$0xff] %v467
    %626 = vst [vmem:[#allocation7 + $0x148] sm:$0xff] %v472
    %627 = vst [vmem:[#allocation7 + $0x150] sm:$0xff] %v477
    %628 = vst [vmem:[#allocation7 + $0x158] sm:$0xff] %v482
    %629 = vst [vmem:[#allocation7 + $0x160] sm:$0xff] %v487
    %630 = vst [vmem:[#allocation7 + $0x168] sm:$0xff] %v492
    %631 = vst [vmem:[#allocation7 + $0x170] sm:$0xff] %v497
    %632 = vst [vmem:[#allocation7 + $0x178] sm:$0xff] %v502
    %633 = vst [vmem:[#allocation7 + $0x180] sm:$0xff] %v507
    %634 = vst [vmem:[#allocation7 + $0x188] sm:$0xff] %v512
    %635 = vst [vmem:[#allocation7 + $0x190] sm:$0xff] %v517
    %636 = vst [vmem:[#allocation7 + $0x198] sm:$0xff] %v522
    %637 = vst [vmem:[#allocation7 + $0x1a0] sm:$0xff] %v527
    %638 = vst [vmem:[#allocation7 + $0x1a8] sm:$0xff] %v532
    %639 = vst [vmem:[#allocation7 + $0x1b0] sm:$0xff] %v537
    %640 = vst [vmem:[#allocation7 + $0x1b8] sm:$0xff] %v542
    %641 = vst [vmem:[#allocation7 + $0x1c0] sm:$0xff] %v547
    %642 = vst [vmem:[#allocation7 + $0x1c8] sm:$0xff] %v552
    %643 = vst [vmem:[#allocation7 + $0x1d0] sm:$0xff] %v557
    %644 = vst [vmem:[#allocation7 + $0x1d8] sm:$0xff] %v562
    %645 = vst [vmem:[#allocation7 + $0x1e0] sm:$0xff] %v567
    %646 = vst [vmem:[#allocation7 + $0x1e8] sm:$0xff] %v572
    %647 = vst [vmem:[#allocation7 + $0x1f0] sm:$0xff] %v577
    %648 = vst [vmem:[#allocation7 + $0x1f8] sm:$0xff] %v582
    // Predicated region
    $region18: #{tpu_custom_call.1} parent=1 // pred_check
      _
    $region19: #{tpu_custom_call.1} parent=1 // pred_check_branch
      %650 = sbr.rel (0) target = $region21
    $region20: #{tpu_custom_call.1} parent=1 // pred_region
      %s652 = ssub.s32 8192, 8192
      %653 = vsyncadd [#allocation4], %s652
      %s654 = sshll.u32 [#allocation7], 4
      %s655 = int_to_ptr.vmem [resolvable:$true] %s654
      %660 = dma.vmem_to_hbm [thread:$0]  %s655, 8192, %s2, [#allocation4], 128, 128, 8
    $region21: #{tpu_custom_call.1} parent=1 // pred_fallthru
      _
    // Predicated region
    $region22: #{tpu_custom_call.1} parent=1 // pred_check
      _
    $region23: #{tpu_custom_call.1} parent=1 // pred_check_branch
      %662 = sbr.rel (0) target = $region25
    $region24: #{tpu_custom_call.1} parent=1 // pred_region
      %663 = dma.done [#allocation4], 8192
    $region25: #{tpu_custom_call.1} parent=1 // pred_fallthru
      _
    %664 = vsyncpa [#allocation3], 1
    %665 = vsyncpa [#allocation6], 1
    %666 = vsyncpa [#allocation4], 1

</llo_original>
